<compile_context>
chip_gen: v6e
topology: v6e:2x2x1
jax: 0.10.0
libtpu: 0.0.40
codegen_flags: <defaults>
</compile_context>

<pallas_src>
import jax
import jax.numpy as jnp
from jax.experimental import pallas as pl
from jax.experimental.pallas import tpu as pltpu

# ---- dims implied by the PyTorch module -------------------------------------
FACULTY = 10
COURSE = 6
GENDER = 3
TEXT_EMB = 64
INPUT_DIM = FACULTY + COURSE + GENDER + TEXT_EMB + 1   # 84
HIDDEN_DIM = 128
OUTPUT_DIM = 128
PADDED_IN = 128                                        # lane-dense / full MXU K


def _mlp_kernel(x_ref, w1_ref, w2_ref, b2_ref, o_ref):
    # fc1 (+ folded bias): (tb, 128) @ (128, hidden) -> (tb, hidden), f32 MXU acc
    h = jnp.dot(x_ref[...], w1_ref[...], preferred_element_type=jnp.float32)
    h = jnp.maximum(h, 0.0)                                   # ReLU on the VPU
    # fc2: (tb, hidden) @ (hidden, out) -> (tb, out)
    y = jnp.dot(h, w2_ref[...], preferred_element_type=jnp.float32)
    o_ref[...] = (y + b2_ref[...]).astype(o_ref.dtype)        # (1, out) broadcast


def profile_mlp(x, w1, b1, w2, b2, *, tb=512):
    """x: (B, INPUT_DIM) f32; w1: (INPUT_DIM, HIDDEN); b1: (HIDDEN,);
       w2: (HIDDEN, OUTPUT); b2: (OUTPUT,). Returns (B, OUTPUT) f32."""
    B, in_dim = x.shape
    hidden = w1.shape[1]
    out_dim = w2.shape[1]
    assert in_dim + 1 <= PADDED_IN

    # --- fold b1 into a zero-padded w1 via a constant-1 feature column -------
    # (done once per call in the wrapper; for static weights XLA hoists it)
    w1_pad = jnp.zeros((PADDED_IN, hidden), w1.dtype)
    w1_pad = w1_pad.at[:in_dim, :].set(w1)
    w1_pad = w1_pad.at[in_dim, :].set(b1)          # row `in_dim` carries the bias
    b2_2d = b2.reshape(1, out_dim)

    # --- pick the batch tile ---------------------------------------------------
    # Multiple of 8 rows (f32 sublane), capped at `tb`, and small enough that the
    # batch axis yields >=2 grid steps when B is big enough (v7x megacore).
    half_batch_tiles = max(1, pl.cdiv(B, 2 * 8))   # ceil(B/2) in units of 8 rows
    tile = min(tb, 8 * half_batch_tiles)
    tile = max(8, (tile // 8) * 8)
    B_pad = pl.cdiv(B, tile) * tile

    # --- pad x: zero rows for the batch tail, zero cols + bias column ----------
    x_pad = jnp.zeros((B_pad, PADDED_IN), x.dtype)
    x_pad = x_pad.at[:B, :in_dim].set(x)
    x_pad = x_pad.at[:B, in_dim].set(1.0)          # bias-fold column

    grid = (B_pad // tile,)
    flops = 2 * B_pad * (PADDED_IN * hidden + hidden * out_dim)
    bytes_accessed = 4 * (x_pad.size + w1_pad.size + w2.size
                          + b2_2d.size + B_pad * out_dim)

    out = pl.pallas_call(
        _mlp_kernel,
        out_shape=jax.ShapeDtypeStruct((B_pad, out_dim), x.dtype),
        grid_spec=pltpu.PrefetchScalarGridSpec(
            num_scalar_prefetch=0,
            grid=grid,
            in_specs=[
                # batch tile of the (padded) input; last dim = 128 -> lane dense
                pl.BlockSpec((tile, PADDED_IN), lambda i: (i, 0)),
                # weights / bias: same full block for every grid step (no re-DMA)
                pl.BlockSpec((PADDED_IN, hidden), lambda i: (0, 0)),
                pl.BlockSpec((hidden, out_dim), lambda i: (0, 0)),
                pl.BlockSpec((1, out_dim), lambda i: (0, 0)),
            ],
            out_specs=pl.BlockSpec((tile, out_dim), lambda i: (i, 0)),
        ),
        compiler_params=pltpu.CompilerParams(
            dimension_semantics=("parallel",),
        ),
        cost_estimate=pl.CostEstimate(
            flops=flops, transcendentals=0, bytes_accessed=bytes_accessed),
    )(x_pad, w1_pad, w2, b2_2d)
    return out[:B]


def _ref_mlp(x, w1, b1, w2, b2):
    h = jnp.maximum(x @ w1 + b1, 0.0)
    return h @ w2 + b2


if __name__ == "__main__":
    key = jax.random.PRNGKey(0)
    k_x, k_w1, k_b1, k_w2, k_b2 = jax.random.split(key, 5)

    B = 8  # small batch; at this size the call is overhead-bound by design
    x = jax.random.normal(k_x, (B, INPUT_DIM), dtype=jnp.float32)

    # Deterministic "init" mimicking nn.Linear's uniform(-1/sqrt(fan_in), 1/sqrt(fan_in))
    bound1 = 1.0 / (INPUT_DIM ** 0.5)
    w1 = jax.random.uniform(k_w1, (INPUT_DIM, HIDDEN_DIM), jnp.float32, -bound1, bound1)
    b1 = jax.random.uniform(k_b1, (HIDDEN_DIM,), jnp.float32, -bound1, bound1)
    bound2 = 1.0 / (HIDDEN_DIM ** 0.5)
    w2 = jax.random.uniform(k_w2, (HIDDEN_DIM, OUTPUT_DIM), jnp.float32, -bound2, bound2)
    b2 = jax.random.uniform(k_b2, (OUTPUT_DIM,), jnp.float32, -bound2, bound2)

    out = profile_mlp(x, w1, b1, w2, b2)
    out = jax.block_until_ready(out)

    ref = _ref_mlp(x, w1, b1, w2, b2)
    assert out.shape == (B, OUTPUT_DIM)
    assert jnp.allclose(out, ref, atol=1e-5, rtol=1e-5)

    print("KERNEL_OK")
</pallas_src>

<mosaic_0001>
module attributes {stable_mosaic.version = 11 : i64} {
  func.func @_mlp_kernel(%arg0: i32, %arg1: memref<8x128xf32, #tpu.memory_space<vmem>>, %arg2: memref<128x128xf32, #tpu.memory_space<vmem>>, %arg3: memref<128x128xf32, #tpu.memory_space<vmem>>, %arg4: memref<1x128xf32, #tpu.memory_space<vmem>>, %arg5: memref<8x128xf32, #tpu.memory_space<vmem>>) attributes {dimension_semantics = [#tpu.dimension_semantics<parallel>], iteration_bounds = array<i64: 1>, scalar_prefetch = 0 : i64, scratch_operands = 0 : i64, tpu.core_type = #tpu.core_type<tc>, window_params = [{transform_indices = @transform_0, window_bounds = array<i64: 8, 128>}, {pipeline_mode = #tpu.pipeline_mode<synchronous>, transform_indices = @transform_1, window_bounds = array<i64: 128, 128>}, {pipeline_mode = #tpu.pipeline_mode<synchronous>, transform_indices = @transform_2, window_bounds = array<i64: 128, 128>}, {pipeline_mode = #tpu.pipeline_mode<synchronous>, transform_indices = @transform_3, window_bounds = array<i64: 1, 128>}, {transform_indices = @transform_4, window_bounds = array<i64: 8, 128>}]} {
    %c0 = arith.constant 0 : index
    %c0_0 = arith.constant 0 : index
    %0 = vector.load %arg1[%c0, %c0_0] : memref<8x128xf32, #tpu.memory_space<vmem>>, vector<8x128xf32>
    %c0_1 = arith.constant 0 : index
    %c0_2 = arith.constant 0 : index
    %1 = vector.load %arg2[%c0_1, %c0_2] : memref<128x128xf32, #tpu.memory_space<vmem>>, vector<128x128xf32>
    %cst = arith.constant dense<0.000000e+00> : vector<8x128xf32>
    %2 = tpu.matmul %0, %1, %cst {dimension_numbers = #tpu.dot_dimension_numbers<[1], [0], [0], [1], [0, 0, 1, 1], [], []>} : vector<8x128xf32>, vector<128x128xf32>, vector<8x128xf32> -> vector<8x128xf32>
    %cst_3 = arith.constant 0.000000e+00 : f32
    %3 = vector.broadcast %cst_3 : f32 to vector<8x128xf32>
    %4 = arith.maximumf %2, %3 : vector<8x128xf32>
    %c0_4 = arith.constant 0 : index
    %c0_5 = arith.constant 0 : index
    %5 = vector.load %arg3[%c0_4, %c0_5] : memref<128x128xf32, #tpu.memory_space<vmem>>, vector<128x128xf32>
    %cst_6 = arith.constant dense<0.000000e+00> : vector<8x128xf32>
    %6 = tpu.matmul %4, %5, %cst_6 {dimension_numbers = #tpu.dot_dimension_numbers<[1], [0], [0], [1], [0, 0, 1, 1], [], []>} : vector<8x128xf32>, vector<128x128xf32>, vector<8x128xf32> -> vector<8x128xf32>
    %c0_7 = arith.constant 0 : index
    %c0_8 = arith.constant 0 : index
    %7 = vector.load %arg4[%c0_7, %c0_8] : memref<1x128xf32, #tpu.memory_space<vmem>>, vector<1x128xf32>
    %8 = vector.broadcast %7 : vector<1x128xf32> to vector<8x128xf32>
    %9 = arith.addf %6, %8 : vector<8x128xf32>
    %c0_9 = arith.constant 0 : index
    %c0_10 = arith.constant 0 : index
    %10 = vector.load %arg5[%c0_9, %c0_10] : memref<8x128xf32, #tpu.memory_space<vmem>>, vector<8x128xf32>
    tpu.vector_store %arg5[%c0_9, %c0_10], %9 {strides = array<i32>} : memref<8x128xf32, #tpu.memory_space<vmem>>, vector<8x128xf32>,
    return
  }
  func.func @transform_0(%arg0: i32) -> (i32, i32) {
    %c0_i32 = arith.constant 0 : i32
    %c0_i32_0 = arith.constant 0 : i32
    return %arg0, %c0_i32 : i32, i32
  }
  func.func @transform_1(%arg0: i32) -> (i32, i32) {
    %c0_i32 = arith.constant 0 : i32
    %c0_i32_0 = arith.constant 0 : i32
    %c0_i32_1 = arith.constant 0 : i32
    return %c0_i32, %c0_i32_0 : i32, i32
  }
  func.func @transform_2(%arg0: i32) -> (i32, i32) {
    %c0_i32 = arith.constant 0 : i32
    %c0_i32_0 = arith.constant 0 : i32
    %c0_i32_1 = arith.constant 0 : i32
    return %c0_i32, %c0_i32_0 : i32, i32
  }
  func.func @transform_3(%arg0: i32) -> (i32, i32) {
    %c0_i32 = arith.constant 0 : i32
    %c0_i32_0 = arith.constant 0 : i32
    %c0_i32_1 = arith.constant 0 : i32
    return %c0_i32, %c0_i32_0 : i32, i32
  }
  func.func @transform_4(%arg0: i32) -> (i32, i32) {
    %c0_i32 = arith.constant 0 : i32
    %c0_i32_0 = arith.constant 0 : i32
    return %arg0, %c0_i32 : i32, i32
  }
}

</mosaic_0001>

<llo_original>
// kernel: tpu_custom_call.1
$region0: #{tpu_custom_call.1}
  #allocation0 [shape = 'u32[]', space=smem, size = 0x4, offset = 0x4, fixed_abs, tag = 'smem constant byte address 0x4 - core index']
  #allocation1 [shape = 'u32[144,128]{1,0:T(1,128)}', space=vmem, size = 0x12000, scoped, tag = 'internal scratch']
  %s0 = inlined_call_operand.hbm [shape: f32[8,128], index: 0, kind: input, shape index: {}]
  %s1 = inlined_call_operand.hbm [shape: f32[128,128], index: 1, kind: input, shape index: {}]
  %s2 = inlined_call_operand.hbm [shape: f32[128,128], index: 2, kind: input, shape index: {}]
  %s3 = inlined_call_operand.vmem [shape: f32[1,128], index: 3, kind: input, shape index: {}]
  %s4 = inlined_call_operand.hbm [shape: f32[8,128], index: 4, kind: output, shape index: {}]
  %s5 = sld [smem:[#allocation0]]
  $region38: #{tpu_custom_call.1} parent=0
    _
  %s7 = ssub.s32 1, %s5
  %s8 = scalar_select 0, %s7, %s5
  $region1: #{tpu_custom_call.1} parent=0
    #allocation2 [shape = 'u8[4096]{0}', space=vmem, size = 0x1000, scoped, tag = 'input window, operand 0, single buffered']
    #allocation3 [shape = 's32[1]{0}', space=sflag, size = 0x4, scoped, tag = 'scoped memory for tpu_custom_call.1']
    #allocation4 [shape = 's32[1]{0}', space=sflag, size = 0x4, scoped, tag = 'scoped memory for tpu_custom_call.1']
    #allocation5 [shape = 'u8[65536]{0}', space=vmem, size = 0x10000, scoped, tag = 'input window, operand 1, single buffered']
    #allocation6 [shape = 's32[1]{0}', space=sflag, size = 0x4, scoped, tag = 'scoped memory for tpu_custom_call.1']
    #allocation7 [shape = 'u8[65536]{0}', space=vmem, size = 0x10000, scoped, tag = 'input window, operand 2, single buffered']
    #allocation8 [shape = 'u8[4096]{0}', space=vmem, size = 0x1000, scoped, tag = 'output window, operand 0, single buffered']
    %9 = vsyncpa [#allocation3], 0
    %10 = vsyncpa [#allocation6], 0
    %11 = vsyncpa [#allocation4], 0
    // Predicated region
    $region2: #{tpu_custom_call.1} parent=1 // pred_check
      _
    $region3: #{tpu_custom_call.1} parent=1 // pred_check_branch
      %13 = sbr.rel (0) target = $region5
    $region4: #{tpu_custom_call.1} parent=1 // pred_region
      %s15 = ssub.s32 128, 128
      %16 = vsyncadd [#allocation3], %s15
      %s18 = sshll.u32 [#allocation2], 4
      %s19 = int_to_ptr.vmem [resolvable:$true] %s18
      %21 = dma.hbm_to_vmem [thread:$0]  %s0, 128, %s19, [#allocation3]
    $region5: #{tpu_custom_call.1} parent=1 // pred_fallthru
      _
    // Predicated region
    $region6: #{tpu_custom_call.1} parent=1 // pred_check
      _
    $region7: #{tpu_custom_call.1} parent=1 // pred_check_branch
      %23 = sbr.rel (0) target = $region9
    $region8: #{tpu_custom_call.1} parent=1 // pred_region
      %s25 = ssub.s32 2048, 2048
      %26 = vsyncadd [#allocation6], %s25
      %s27 = sshll.u32 [#allocation5], 4
      %s28 = int_to_ptr.vmem [resolvable:$true] %s27
      %33 = dma.hbm_to_vmem [thread:$0]  %s1, 2048, %s28, [#allocation6], 128, 128, 8
    $region9: #{tpu_custom_call.1} parent=1 // pred_fallthru
      _
    // Predicated region
    $region10: #{tpu_custom_call.1} parent=1 // pred_check
      _
    $region11: #{tpu_custom_call.1} parent=1 // pred_check_branch
      %35 = sbr.rel (0) target = $region13
    $region12: #{tpu_custom_call.1} parent=1 // pred_region
      %s37 = ssub.s32 2048, 2048
      %38 = vsyncadd [#allocation6], %s37
      %s39 = sshll.u32 [#allocation7], 4
      %s40 = int_to_ptr.vmem [resolvable:$true] %s39
      %45 = dma.hbm_to_vmem [thread:$0]  %s2, 2048, %s40, [#allocation6], 128, 128, 8
    $region13: #{tpu_custom_call.1} parent=1 // pred_fallthru
      _
    // Predicated region
    $region14: #{tpu_custom_call.1} parent=1 // pred_check
      _
    $region15: #{tpu_custom_call.1} parent=1 // pred_check_branch
      %47 = sbr.rel (0) target = $region17
    $region16: #{tpu_custom_call.1} parent=1 // pred_region
      _
    $region17: #{tpu_custom_call.1} parent=1 // pred_fallthru
      _
    // Predicated region
    $region18: #{tpu_custom_call.1} parent=1 // pred_check
      _
    $region19: #{tpu_custom_call.1} parent=1 // pred_check_branch
      %49 = sbr.rel (0) target = $region21
    $region20: #{tpu_custom_call.1} parent=1 // pred_region
      %50 = dma.done [#allocation3], 128
    $region21: #{tpu_custom_call.1} parent=1 // pred_fallthru
      _
    // Predicated region
    $region22: #{tpu_custom_call.1} parent=1 // pred_check
      _
    $region23: #{tpu_custom_call.1} parent=1 // pred_check_branch
      %52 = sbr.rel (0) target = $region25
    $region24: #{tpu_custom_call.1} parent=1 // pred_region
      %53 = dma.done [#allocation6], 2048
    $region25: #{tpu_custom_call.1} parent=1 // pred_fallthru
      _
    // Predicated region
    $region26: #{tpu_custom_call.1} parent=1 // pred_check
      _
    $region27: #{tpu_custom_call.1} parent=1 // pred_check_branch
      %55 = sbr.rel (0) target = $region29
    $region28: #{tpu_custom_call.1} parent=1 // pred_region
      %56 = dma.done [#allocation6], 2048
    $region29: #{tpu_custom_call.1} parent=1 // pred_fallthru
      _
    %v57 = vld [vmem:[#allocation2] sm:$0xff]
    %v58 = vld [vmem:[#allocation5] sm:$0xff]
    %v59 = vld [vmem:[#allocation5 + $0x8] sm:$0xff]
    %v60 = vld [vmem:[#allocation5 + $0x10] sm:$0xff]
    %v61 = vld [vmem:[#allocation5 + $0x18] sm:$0xff]
    %v62 = vld [vmem:[#allocation5 + $0x20] sm:$0xff]
    %v63 = vld [vmem:[#allocation5 + $0x28] sm:$0xff]
    %v64 = vld [vmem:[#allocation5 + $0x30] sm:$0xff]
    %v65 = vld [vmem:[#allocation5 + $0x38] sm:$0xff]
    %v66 = vld [vmem:[#allocation5 + $0x40] sm:$0xff]
    %v67 = vld [vmem:[#allocation5 + $0x48] sm:$0xff]
    %v68 = vld [vmem:[#allocation5 + $0x50] sm:$0xff]
    %v69 = vld [vmem:[#allocation5 + $0x58] sm:$0xff]
    %v70 = vld [vmem:[#allocation5 + $0x60] sm:$0xff]
    %v71 = vld [vmem:[#allocation5 + $0x68] sm:$0xff]
    %v72 = vld [vmem:[#allocation5 + $0x70] sm:$0xff]
    %v73 = vld [vmem:[#allocation5 + $0x78] sm:$0xff]
    %74 = vmatprep.subr.mxu0 0.0
    %75 = vmatpush1.msra.mxu0 %v73
    %76 = vmatprep.subr.mxu0 0.0
    %77 = vmatpush1.msra.mxu0 %v72
    %78 = vmatprep.subr.mxu0 0.0
    %79 = vmatpush1.msra.mxu0 %v71
    %80 = vmatprep.subr.mxu0 0.0
    %81 = vmatpush1.msra.mxu0 %v70
    %82 = vmatprep.subr.mxu0 0.0
    %83 = vmatpush1.msra.mxu0 %v69
    %84 = vmatprep.subr.mxu0 0.0
    %85 = vmatpush1.msra.mxu0 %v68
    %86 = vmatprep.subr.mxu0 0.0
    %87 = vmatpush1.msra.mxu0 %v67
    %88 = vmatprep.subr.mxu0 0.0
    %89 = vmatpush1.msra.mxu0 %v66
    %90 = vmatprep.subr.mxu0 0.0
    %91 = vmatpush1.msra.mxu0 %v65
    %92 = vmatprep.subr.mxu0 0.0
    %93 = vmatpush1.msra.mxu0 %v64
    %94 = vmatprep.subr.mxu0 0.0
    %95 = vmatpush1.msra.mxu0 %v63
    %96 = vmatprep.subr.mxu0 0.0
    %97 = vmatpush1.msra.mxu0 %v62
    %98 = vmatprep.subr.mxu0 0.0
    %99 = vmatpush1.msra.mxu0 %v61
    %100 = vmatprep.subr.mxu0 0.0
    %101 = vmatpush1.msra.mxu0 %v60
    %102 = vmatprep.subr.mxu0 0.0
    %103 = vmatpush1.msra.mxu0 %v59
    %104 = vmatprep.subr.mxu0 0.0
    %105 = vmatpush1.msra.mxu0 %v58
    %106 = vmatprep.subr.mxu0 0.0
    %107 = vmatpush2.msra.mxu0 0.0
    %108 = vmatprep.subr.mxu0 0.0
    %109 = vmatpush2.msra.mxu0 0.0
    %110 = vmatprep.subr.mxu0 0.0
    %111 = vmatpush2.msra.mxu0 0.0
    %112 = vmatprep.subr.mxu0 0.0
    %113 = vmatpush2.msra.mxu0 0.0
    %114 = vmatprep.subr.mxu0 0.0
    %115 = vmatpush2.msra.mxu0 0.0
    %116 = vmatprep.subr.mxu0 0.0
    %117 = vmatpush2.msra.mxu0 0.0
    %118 = vmatprep.subr.mxu0 0.0
    %119 = vmatpush2.msra.mxu0 0.0
    %120 = vmatprep.subr.mxu0 0.0
    %121 = vmatpush2.msra.mxu0 0.0
    %122 = vmatprep.subr.mxu0 0.0
    %123 = vmatpush2.msra.mxu0 0.0
    %124 = vmatprep.subr.mxu0 0.0
    %125 = vmatpush2.msra.mxu0 0.0
    %126 = vmatprep.subr.mxu0 0.0
    %127 = vmatpush2.msra.mxu0 0.0
    %128 = vmatprep.subr.mxu0 0.0
    %129 = vmatpush2.msra.mxu0 0.0
    %130 = vmatprep.subr.mxu0 0.0
    %131 = vmatpush2.msra.mxu0 0.0
    %132 = vmatprep.subr.mxu0 0.0
    %133 = vmatpush2.msra.mxu0 0.0
    %134 = vmatprep.subr.mxu0 0.0
    %135 = vmatpush2.msra.mxu0 0.0
    %136 = vmatprep.subr.mxu0 0.0
    %137 = vmatpush2.msra.mxu0 0.0
    %138 = vmatprep.mubr.f32.mxu0 0.0
    %139 = vmatmul.mubr.f32.gmra.mxu0 %v57
    %v140 = vpop.f32.mrf.mxu0
    %v141 = vadd.f32 0.0, %v140
    %v142 = vpop.f32.mrf.mxu0
    %143 = vdwg.mxu0
    %v144 = vmax.f32 %v141, 0.0
    %v145 = vld [vmem:[#allocation7] sm:$0xff]
    %v146 = vld [vmem:[#allocation7 + $0x8] sm:$0xff]
    %v147 = vld [vmem:[#allocation7 + $0x10] sm:$0xff]
    %v148 = vld [vmem:[#allocation7 + $0x18] sm:$0xff]
    %v149 = vld [vmem:[#allocation7 + $0x20] sm:$0xff]
    %v150 = vld [vmem:[#allocation7 + $0x28] sm:$0xff]
    %v151 = vld [vmem:[#allocation7 + $0x30] sm:$0xff]
    %v152 = vld [vmem:[#allocation7 + $0x38] sm:$0xff]
    %v153 = vld [vmem:[#allocation7 + $0x40] sm:$0xff]
    %v154 = vld [vmem:[#allocation7 + $0x48] sm:$0xff]
    %v155 = vld [vmem:[#allocation7 + $0x50] sm:$0xff]
    %v156 = vld [vmem:[#allocation7 + $0x58] sm:$0xff]
    %v157 = vld [vmem:[#allocation7 + $0x60] sm:$0xff]
    %v158 = vld [vmem:[#allocation7 + $0x68] sm:$0xff]
    %v159 = vld [vmem:[#allocation7 + $0x70] sm:$0xff]
    %v160 = vld [vmem:[#allocation7 + $0x78] sm:$0xff]
    %v161 = vld [vmem:[%s3] sm:$0x1]
    %v163 = vlaneseq
    %v164 = vshrl.u32 %v163, 7
    %v165 = vsub.s32 0, %v164
    %v166 = vrot.slane %v161, %v165
    %168 = vmatprep.subr.mxu0 0.0
    %169 = vmatpush1.msra.mxu0 %v160
    %170 = vmatprep.subr.mxu0 0.0
    %171 = vmatpush1.msra.mxu0 %v159
    %172 = vmatprep.subr.mxu0 0.0
    %173 = vmatpush1.msra.mxu0 %v158
    %174 = vmatprep.subr.mxu0 0.0
    %175 = vmatpush1.msra.mxu0 %v157
    %176 = vmatprep.subr.mxu0 0.0
    %177 = vmatpush1.msra.mxu0 %v156
    %178 = vmatprep.subr.mxu0 0.0
    %179 = vmatpush1.msra.mxu0 %v155
    %180 = vmatprep.subr.mxu0 0.0
    %181 = vmatpush1.msra.mxu0 %v154
    %182 = vmatprep.subr.mxu0 0.0
    %183 = vmatpush1.msra.mxu0 %v153
    %184 = vmatprep.subr.mxu0 0.0
    %185 = vmatpush1.msra.mxu0 %v152
    %186 = vmatprep.subr.mxu0 0.0
    %187 = vmatpush1.msra.mxu0 %v151
    %188 = vmatprep.subr.mxu0 0.0
    %189 = vmatpush1.msra.mxu0 %v150
    %190 = vmatprep.subr.mxu0 0.0
    %191 = vmatpush1.msra.mxu0 %v149
    %192 = vmatprep.subr.mxu0 0.0
    %193 = vmatpush1.msra.mxu0 %v148
    %194 = vmatprep.subr.mxu0 0.0
    %195 = vmatpush1.msra.mxu0 %v147
    %196 = vmatprep.subr.mxu0 0.0
    %197 = vmatpush1.msra.mxu0 %v146
    %198 = vmatprep.subr.mxu0 0.0
    %199 = vmatpush1.msra.mxu0 %v145
    %200 = vmatprep.subr.mxu0 0.0
    %201 = vmatpush2.msra.mxu0 0.0
    %202 = vmatprep.subr.mxu0 0.0
    %203 = vmatpush2.msra.mxu0 0.0
    %204 = vmatprep.subr.mxu0 0.0
    %205 = vmatpush2.msra.mxu0 0.0
    %206 = vmatprep.subr.mxu0 0.0
    %207 = vmatpush2.msra.mxu0 0.0
    %208 = vmatprep.subr.mxu0 0.0
    %209 = vmatpush2.msra.mxu0 0.0
    %210 = vmatprep.subr.mxu0 0.0
    %211 = vmatpush2.msra.mxu0 0.0
    %212 = vmatprep.subr.mxu0 0.0
    %213 = vmatpush2.msra.mxu0 0.0
    %214 = vmatprep.subr.mxu0 0.0
    %215 = vmatpush2.msra.mxu0 0.0
    %216 = vmatprep.subr.mxu0 0.0
    %217 = vmatpush2.msra.mxu0 0.0
    %218 = vmatprep.subr.mxu0 0.0
    %219 = vmatpush2.msra.mxu0 0.0
    %220 = vmatprep.subr.mxu0 0.0
    %221 = vmatpush2.msra.mxu0 0.0
    %222 = vmatprep.subr.mxu0 0.0
    %223 = vmatpush2.msra.mxu0 0.0
    %224 = vmatprep.subr.mxu0 0.0
    %225 = vmatpush2.msra.mxu0 0.0
    %226 = vmatprep.subr.mxu0 0.0
    %227 = vmatpush2.msra.mxu0 0.0
    %228 = vmatprep.subr.mxu0 0.0
    %229 = vmatpush2.msra.mxu0 0.0
    %230 = vmatprep.subr.mxu0 0.0
    %231 = vmatpush2.msra.mxu0 0.0
    %232 = vmatprep.mubr.f32.mxu0 0.0
    %233 = vmatmul.mubr.f32.gmra.mxu0 %v144
    %v234 = vpop.f32.mrf.mxu0
    %v235 = vadd.f32 %v166, %v234
    %v236 = vpop.f32.mrf.mxu0
    %237 = vdwg.mxu0
    %238 = vst [vmem:[#allocation8] sm:$0xff] %v235
    // Predicated region
    $region30: #{tpu_custom_call.1} parent=1 // pred_check
      _
    $region31: #{tpu_custom_call.1} parent=1 // pred_check_branch
      %240 = sbr.rel (0) target = $region33
    $region32: #{tpu_custom_call.1} parent=1 // pred_region
      %s242 = ssub.s32 128, 128
      %243 = vsyncadd [#allocation4], %s242
      %s245 = sshll.u32 [#allocation8], 4
      %s246 = int_to_ptr.vmem [resolvable:$true] %s245
      %248 = dma.vmem_to_hbm [thread:$0]  %s246, 128, %s4, [#allocation4]
    $region33: #{tpu_custom_call.1} parent=1 // pred_fallthru
      _
    // Predicated region
    $region34: #{tpu_custom_call.1} parent=1 // pred_check
      _
    $region35: #{tpu_custom_call.1} parent=1 // pred_check_branch
      %250 = sbr.rel (0) target = $region37
    $region36: #{tpu_custom_call.1} parent=1 // pred_region
      %251 = dma.done [#allocation4], 128
    $region37: #{tpu_custom_call.1} parent=1 // pred_fallthru
      _
    %252 = vsyncpa [#allocation3], 1
    %253 = vsyncpa [#allocation6], 1
    %254 = vsyncpa [#allocation4], 1

</llo_original>
